<compile_context>
chip_gen: v7x
topology: tpu7x:2x2x1
jax: 0.10.0
libtpu: 0.0.40
codegen_flags: <defaults>
</compile_context>

<pallas_src>
import jax
import jax.numpy as jnp
from jax.experimental import pallas as pl
from jax.experimental.pallas import tpu as pltpu


def class_std_kernel(x_ref, rs_ref, stats_ref, res_ref, new_rs_ref):
    x = x_ref[...].astype(jnp.float32)                               # (N, tile_f)
    n = x.shape[0]

    # Batch statistics over the class axis (single sublane/XLU reduction per tile).
    mean = jnp.sum(x, axis=0, keepdims=True) * jnp.float32(1.0 / n)  # (1, tile_f)
    centered = x - mean
    # TODO(synk): for N == 1 PyTorch's unbiased var is NaN; we clamp the divisor instead.
    var = jnp.sum(centered * centered, axis=0, keepdims=True) * jnp.float32(1.0 / max(n - 1, 1))

    # Hoisted broadcast divide: one exact (1, tile_f) reciprocal + N x tile_f cheap muls.
    inv = 1.0 / (var + jnp.float32(1e-5))
    # Module divides by (var + eps), NOT sqrt(var) — intentional, matches the PyTorch source.
    res_ref[...] = (centered * inv).astype(res_ref.dtype)

    # Packed batch stats: row 0 = mean, row 1 = var (single (2, tile_f) output stream).
    stats_ref[0:1, :] = mean
    stats_ref[1:2, :] = var

    # Running-stat EMA update, packed and written back into the aliased input buffer.
    rs = rs_ref[...]                                                 # (2, tile_f) single load
    new_rs_ref[0:1, :] = 0.9 * rs[0:1, :] + 0.1 * mean
    new_rs_ref[1:2, :] = 0.9 * rs[1:2, :] + 0.1 * var


def _pick_tile_f(N, F):
    """Largest lane-dense tile dividing F, capped by vreg pressure and scoped VMEM."""
    if F % 128 != 0:
        return F                                   # full-array block: always legal
    # Double-buffered f32 bytes per lane per step: x in (N) + result out (N) + 3x 2-row stats.
    bytes_per_lane = 2 * (2 * N + 6) * 4
    vmem_budget = 12 * 1024 * 1024                 # stay well inside v5e's 16 MiB scoped default
    cap = min(2048, max(128, (vmem_budget // bytes_per_lane) // 128 * 128))
    if F <= cap:
        return F                                   # grid=(1,): one DMA in / one DMA out per array
    for t in range(cap, 127, -128):                # largest multiple of 128 that divides F
        if F % t == 0:
            return t
    return F


def class_standardization_forward(class_feats, running_mean, running_var, *, tile_f=None):
    """class_feats: (N, F). running_mean/var: (F,).

    Returns (batch_mean, batch_var, result, new_running_mean, new_running_var);
    the module's forward() return value is the leading (batch_mean, batch_var) pair.
    """
    N, F = class_feats.shape

    # Pack the two running-stat vectors into one (2, F) buffer (aliased to its output below).
    rs = jnp.stack([running_mean, running_var], axis=0)
    if rs.dtype != jnp.float32:
        rs = rs.astype(jnp.float32)

    if tile_f is None:
        tile_f = _pick_tile_f(N, F)
    assert F % tile_f == 0, "tile_f must divide feat_dim"
    grid = (F // tile_f,)

    x_spec = pl.BlockSpec((N, tile_f), lambda i: (0, i))
    row2_spec = pl.BlockSpec((2, tile_f), lambda i: (0, i))

    # Raise the scoped VMEM limit only when needed (v5e defaults to 16 MiB); keep it modest
    # so over-sized requests never collide with v7x's 64 MiB physical VMEM.
    step_bytes = 2 * (2 * N + 6) * tile_f * 4
    vmem_limit = None
    if step_bytes > 8 * 1024 * 1024:
        vmem_limit = min(max(32 * 1024 * 1024, 2 * step_bytes), 48 * 1024 * 1024)

    stats, result, new_rs = pl.pallas_call(
        class_std_kernel,
        out_shape=(
            jax.ShapeDtypeStruct((2, F), jnp.float32),            # [batch_mean; batch_var]
            jax.ShapeDtypeStruct((N, F), class_feats.dtype),      # standardized result
            jax.ShapeDtypeStruct((2, F), jnp.float32),            # [new_run_mean; new_run_var]
        ),
        grid_spec=pltpu.PrefetchScalarGridSpec(
            num_scalar_prefetch=0,
            grid=grid,
            in_specs=[x_spec, row2_spec],
            out_specs=(row2_spec, x_spec, row2_spec),
        ),
        input_output_aliases={1: 2},    # running-stat buffer updated in place
        compiler_params=pltpu.CompilerParams(
            dimension_semantics=("parallel",),
            vmem_limit_bytes=vmem_limit,
        ),
    )(class_feats, rs)

    return (stats[0], stats[1], result, new_rs[0], new_rs[1])


if __name__ == "__main__":
    # Small shapes consistent with the module: class_feats is [num_classes, feat_dim].
    num_classes, feat_dim = 16, 512

    key = jax.random.PRNGKey(0)
    class_feats = jax.random.normal(key, (num_classes, feat_dim), dtype=jnp.float32)
    running_mean = jnp.zeros((feat_dim,), dtype=jnp.float32)
    running_var = jnp.ones((feat_dim,), dtype=jnp.float32)

    outs = class_standardization_forward(class_feats, running_mean, running_var)
    batch_mean, batch_var, result, new_rm, new_rv = jax.block_until_ready(outs)

    # Pure-JAX reference.
    ref_mean = class_feats.mean(axis=0)
    ref_var = class_feats.var(axis=0, ddof=1)            # PyTorch var default: unbiased
    ref_result = (class_feats - ref_mean[None, :]) / (ref_var[None, :] + 1e-5)
    ref_rm = 0.9 * running_mean + 0.1 * ref_mean
    ref_rv = 0.9 * running_var + 0.1 * ref_var

    assert batch_mean.shape == (feat_dim,)
    assert batch_var.shape == (feat_dim,)
    assert result.shape == (num_classes, feat_dim)
    assert jnp.allclose(batch_mean, ref_mean, atol=1e-5, rtol=1e-5)
    assert jnp.allclose(batch_var, ref_var, atol=1e-5, rtol=1e-5)
    assert jnp.allclose(result, ref_result, atol=1e-4, rtol=1e-5)
    assert jnp.allclose(new_rm, ref_rm, atol=1e-5, rtol=1e-5)
    assert jnp.allclose(new_rv, ref_rv, atol=1e-5, rtol=1e-5)

    print("KERNEL_OK")
</pallas_src>

<mosaic_0001>
module attributes {stable_mosaic.version = 11 : i64} {
  func.func @class_std_kernel(%arg0: i32, %arg1: memref<16x512xf32, #tpu.memory_space<vmem>>, %arg2: memref<2x512xf32, #tpu.memory_space<vmem>>, %arg3: memref<2x512xf32, #tpu.memory_space<vmem>>, %arg4: memref<16x512xf32, #tpu.memory_space<vmem>>, %arg5: memref<2x512xf32, #tpu.memory_space<vmem>>) attributes {dimension_semantics = [#tpu.dimension_semantics<parallel>], iteration_bounds = array<i64: 1>, scalar_prefetch = 0 : i64, scratch_operands = 0 : i64, tpu.core_type = #tpu.core_type<tc>, window_params = [{transform_indices = @transform_0, window_bounds = array<i64: 16, 512>}, {transform_indices = @transform_1, window_bounds = array<i64: 2, 512>}, {transform_indices = @transform_2, window_bounds = array<i64: 2, 512>}, {transform_indices = @transform_3, window_bounds = array<i64: 16, 512>}, {transform_indices = @transform_4, window_bounds = array<i64: 2, 512>}]} {
    %c0 = arith.constant 0 : index
    %c0_0 = arith.constant 0 : index
    %0 = vector.load %arg1[%c0, %c0_0] : memref<16x512xf32, #tpu.memory_space<vmem>>, vector<16x512xf32>
    %cst = arith.constant dense<0.000000e+00> : vector<512xf32>
    %1 = vector.multi_reduction <add>, %0, %cst [0] : vector<16x512xf32> to vector<512xf32>
    %2 = vector.shape_cast %1 : vector<512xf32> to vector<1x512xf32>
    %cst_1 = arith.constant 6.250000e-02 : f32
    %3 = vector.broadcast %cst_1 : f32 to vector<1x512xf32>
    %4 = arith.mulf %2, %3 : vector<1x512xf32>
    %5 = vector.broadcast %4 : vector<1x512xf32> to vector<16x512xf32>
    %6 = arith.subf %0, %5 : vector<16x512xf32>
    %7 = arith.mulf %6, %6 : vector<16x512xf32>
    %cst_2 = arith.constant dense<0.000000e+00> : vector<512xf32>
    %8 = vector.multi_reduction <add>, %7, %cst_2 [0] : vector<16x512xf32> to vector<512xf32>
    %9 = vector.shape_cast %8 : vector<512xf32> to vector<1x512xf32>
    %cst_3 = arith.constant 0.0666666701 : f32
    %10 = vector.broadcast %cst_3 : f32 to vector<1x512xf32>
    %11 = arith.mulf %9, %10 : vector<1x512xf32>
    %cst_4 = arith.constant 9.99999974E-6 : f32
    %12 = vector.broadcast %cst_4 : f32 to vector<1x512xf32>
    %13 = arith.addf %11, %12 : vector<1x512xf32>
    %cst_5 = arith.constant 1.000000e+00 : f32
    %14 = vector.broadcast %cst_5 : f32 to vector<1x512xf32>
    %15 = arith.divf %14, %13 : vector<1x512xf32>
    %16 = vector.broadcast %15 : vector<1x512xf32> to vector<16x512xf32>
    %17 = arith.mulf %6, %16 : vector<16x512xf32>
    %c0_6 = arith.constant 0 : index
    %c0_7 = arith.constant 0 : index
    %18 = vector.load %arg4[%c0_6, %c0_7] : memref<16x512xf32, #tpu.memory_space<vmem>>, vector<16x512xf32>
    tpu.vector_store %arg4[%c0_6, %c0_7], %17 {strides = array<i32>} : memref<16x512xf32, #tpu.memory_space<vmem>>, vector<16x512xf32>,
    %c0_8 = arith.constant 0 : index
    %c0_9 = arith.constant 0 : index
    %19 = vector.load %arg3[%c0_8, %c0_9] : memref<2x512xf32, #tpu.memory_space<vmem>>, vector<1x512xf32>
    tpu.vector_store %arg3[%c0_8, %c0_9], %4 {strides = array<i32>} : memref<2x512xf32, #tpu.memory_space<vmem>>, vector<1x512xf32>,
    %c1 = arith.constant 1 : index
    %c0_10 = arith.constant 0 : index
    %20 = vector.load %arg3[%c1, %c0_10] : memref<2x512xf32, #tpu.memory_space<vmem>>, vector<1x512xf32>
    tpu.vector_store %arg3[%c1, %c0_10], %11 {strides = array<i32>} : memref<2x512xf32, #tpu.memory_space<vmem>>, vector<1x512xf32>,
    %c0_11 = arith.constant 0 : index
    %c0_12 = arith.constant 0 : index
    %21 = vector.load %arg2[%c0_11, %c0_12] : memref<2x512xf32, #tpu.memory_space<vmem>>, vector<2x512xf32>
    %22 = vector.extract_strided_slice %21 {offsets = [0, 0], sizes = [1, 512], strides = [1, 1]} : vector<2x512xf32> to vector<1x512xf32>
    %cst_13 = arith.constant 0.899999976 : f32
    %23 = vector.broadcast %cst_13 : f32 to vector<1x512xf32>
    %24 = arith.mulf %23, %22 : vector<1x512xf32>
    %cst_14 = arith.constant 1.000000e-01 : f32
    %25 = vector.broadcast %cst_14 : f32 to vector<1x512xf32>
    %26 = arith.mulf %25, %4 : vector<1x512xf32>
    %27 = arith.addf %24, %26 : vector<1x512xf32>
    %c0_15 = arith.constant 0 : index
    %c0_16 = arith.constant 0 : index
    %28 = vector.load %arg5[%c0_15, %c0_16] : memref<2x512xf32, #tpu.memory_space<vmem>>, vector<1x512xf32>
    tpu.vector_store %arg5[%c0_15, %c0_16], %27 {strides = array<i32>} : memref<2x512xf32, #tpu.memory_space<vmem>>, vector<1x512xf32>,
    %29 = vector.extract_strided_slice %21 {offsets = [1, 0], sizes = [1, 512], strides = [1, 1]} : vector<2x512xf32> to vector<1x512xf32>
    %cst_17 = arith.constant 0.899999976 : f32
    %30 = vector.broadcast %cst_17 : f32 to vector<1x512xf32>
    %31 = arith.mulf %30, %29 : vector<1x512xf32>
    %cst_18 = arith.constant 1.000000e-01 : f32
    %32 = vector.broadcast %cst_18 : f32 to vector<1x512xf32>
    %33 = arith.mulf %32, %11 : vector<1x512xf32>
    %34 = arith.addf %31, %33 : vector<1x512xf32>
    %c1_19 = arith.constant 1 : index
    %c0_20 = arith.constant 0 : index
    %35 = vector.load %arg5[%c1_19, %c0_20] : memref<2x512xf32, #tpu.memory_space<vmem>>, vector<1x512xf32>
    tpu.vector_store %arg5[%c1_19, %c0_20], %34 {strides = array<i32>} : memref<2x512xf32, #tpu.memory_space<vmem>>, vector<1x512xf32>,
    return
  }
  func.func @transform_0(%arg0: i32) -> (i32, i32) {
    %c0_i32 = arith.constant 0 : i32
    %c0_i32_0 = arith.constant 0 : i32
    return %c0_i32, %arg0 : i32, i32
  }
  func.func @transform_1(%arg0: i32) -> (i32, i32) {
    %c0_i32 = arith.constant 0 : i32
    %c0_i32_0 = arith.constant 0 : i32
    return %c0_i32, %arg0 : i32, i32
  }
  func.func @transform_2(%arg0: i32) -> (i32, i32) {
    %c0_i32 = arith.constant 0 : i32
    %c0_i32_0 = arith.constant 0 : i32
    return %c0_i32, %arg0 : i32, i32
  }
  func.func @transform_3(%arg0: i32) -> (i32, i32) {
    %c0_i32 = arith.constant 0 : i32
    %c0_i32_0 = arith.constant 0 : i32
    return %c0_i32, %arg0 : i32, i32
  }
  func.func @transform_4(%arg0: i32) -> (i32, i32) {
    %c0_i32 = arith.constant 0 : i32
    %c0_i32_0 = arith.constant 0 : i32
    return %c0_i32, %arg0 : i32, i32
  }
}

</mosaic_0001>

<llo_original>
// kernel: tpu_custom_call.1
$region0: #{tpu_custom_call.1}
  #allocation0 [shape = 'u32[]', space=smem, size = 0x4, offset = 0x4, fixed_abs, tag = 'smem constant byte address 0x4 - core index']
  #allocation1 [shape = 'u32[144,128]{1,0:T(1,128)}', space=vmem, size = 0x12000, scoped, tag = 'internal scratch']
  %s0 = inlined_call_operand.hbm [shape: f32[16,512], index: 0, kind: input, shape index: {}]
  %s1 = inlined_call_operand.hbm [shape: f32[2,512], index: 1, kind: input, shape index: {}, may-alias: {1,4}]
  %s2 = inlined_call_operand.hbm [shape: f32[2,512], index: 2, kind: output, shape index: {0}]
  %s3 = inlined_call_operand.hbm [shape: f32[16,512], index: 3, kind: output, shape index: {1}]
  %s4 = inlined_call_operand.hbm [shape: f32[2,512], index: 4, kind: output, shape index: {2}, may-alias: {1,4}]
  %5 = xla_tuple %s2, %s3, %s4
  %s6 = sld [smem:[#allocation0]]
  $region42: #{tpu_custom_call.1} parent=0
    _
  %s8 = ssub.s32 1, %s6
  %s9 = scalar_select 0, %s8, %s6
  $region1: #{tpu_custom_call.1} parent=0
    #allocation2 [shape = 'u8[32768]{0}', space=vmem, size = 0x8000, scoped, tag = 'input window, operand 0, single buffered']
    #allocation3 [shape = 's32[1]{0}', space=sflag, size = 0x4, scoped, tag = 'scoped memory for tpu_custom_call.1']
    #allocation4 [shape = 's32[1]{0}', space=sflag, size = 0x4, scoped, tag = 'scoped memory for tpu_custom_call.1']
    #allocation5 [shape = 'u8[4096]{0}', space=vmem, size = 0x1000, scoped, tag = 'input window, operand 1, single buffered']
    #allocation6 [shape = 's32[1]{0}', space=sflag, size = 0x4, scoped, tag = 'scoped memory for tpu_custom_call.1']
    #allocation7 [shape = 'u8[4096]{0}', space=vmem, size = 0x1000, scoped, tag = 'output window, operand 0, single buffered']
    #allocation8 [shape = 'u8[32768]{0}', space=vmem, size = 0x8000, scoped, tag = 'output window, operand 1, single buffered']
    #allocation9 [shape = 's32[1]{0}', space=sflag, size = 0x4, scoped, tag = 'scoped memory for tpu_custom_call.1']
    #allocation10 [shape = 'u8[4096]{0}', space=vmem, size = 0x1000, scoped, tag = 'output window, operand 2, single buffered']
    %10 = vsyncpa [#allocation3], 0
    %11 = vsyncpa [#allocation6], 0
    %12 = vsyncpa [#allocation4], 0
    %13 = vsyncpa [#allocation9], 0
    // Predicated region
    $region2: #{tpu_custom_call.1} parent=1 // pred_check
      _
    $region3: #{tpu_custom_call.1} parent=1 // pred_check_branch
      %15 = sbr.rel (0) target = $region5
    $region4: #{tpu_custom_call.1} parent=1 // pred_region
      %s17 = ssub.s32 1024, 1024
      %18 = vsyncadd [#allocation3], %s17
      %s19 = sshll.u32 [#allocation2], 4
      %s20 = int_to_ptr.vmem [resolvable:$true] %s19
      %25 = dma.hbm_to_vmem [thread:$0]  %s0, 1024, %s20, [#allocation3], 512, 512, 32
    $region5: #{tpu_custom_call.1} parent=1 // pred_fallthru
      _
    // Predicated region
    $region6: #{tpu_custom_call.1} parent=1 // pred_check
      _
    $region7: #{tpu_custom_call.1} parent=1 // pred_check_branch
      %27 = sbr.rel (0) target = $region9
    $region8: #{tpu_custom_call.1} parent=1 // pred_region
      %s29 = ssub.s32 128, 128
      %30 = vsyncadd [#allocation6], %s29
      %s32 = sshll.u32 [#allocation5], 4
      %s33 = int_to_ptr.vmem [resolvable:$true] %s32
      %35 = dma.hbm_to_vmem [thread:$0]  %s1, 128, %s33, [#allocation6]
    $region9: #{tpu_custom_call.1} parent=1 // pred_fallthru
      _
    // Predicated region
    $region10: #{tpu_custom_call.1} parent=1 // pred_check
      _
    $region11: #{tpu_custom_call.1} parent=1 // pred_check_branch
      %37 = sbr.rel (0) target = $region13
    $region12: #{tpu_custom_call.1} parent=1 // pred_region
      %38 = dma.done [#allocation3], 1024
    $region13: #{tpu_custom_call.1} parent=1 // pred_fallthru
      _
    // Predicated region
    $region14: #{tpu_custom_call.1} parent=1 // pred_check
      _
    $region15: #{tpu_custom_call.1} parent=1 // pred_check_branch
      %40 = sbr.rel (0) target = $region17
    $region16: #{tpu_custom_call.1} parent=1 // pred_region
      %41 = dma.done [#allocation6], 128
    $region17: #{tpu_custom_call.1} parent=1 // pred_fallthru
      _
    %v42 = vld [vmem:[#allocation2] sm:$0xff]
    %v43 = vld [vmem:[#allocation2 + $0x8] sm:$0xff]
    %v44 = vld [vmem:[#allocation2 + $0x10] sm:$0xff]
    %v45 = vld [vmem:[#allocation2 + $0x18] sm:$0xff]
    %v46 = vld [vmem:[#allocation2 + $0x20] sm:$0xff]
    %v47 = vld [vmem:[#allocation2 + $0x28] sm:$0xff]
    %v48 = vld [vmem:[#allocation2 + $0x30] sm:$0xff]
    %v49 = vld [vmem:[#allocation2 + $0x38] sm:$0xff]
    %v50 = vadd.f32 %v42, %v46
    %v51 = vrot.slane %v50, 4
    %v52 = vadd.f32 %v50, %v51
    %v53 = vrot.slane %v52, 2
    %v54 = vadd.f32 %v52, %v53
    %v55 = vrot.slane %v54, 1
    %v56 = vadd.f32 %v54, %v55
    %v57 = vadd.f32 %v43, %v47
    %v58 = vrot.slane %v57, 4
    %v59 = vadd.f32 %v57, %v58
    %v60 = vrot.slane %v59, 2
    %v61 = vadd.f32 %v59, %v60
    %v62 = vrot.slane %v61, 1
    %v63 = vadd.f32 %v61, %v62
    %v64 = vadd.f32 %v44, %v48
    %v65 = vrot.slane %v64, 4
    %v66 = vadd.f32 %v64, %v65
    %v67 = vrot.slane %v66, 2
    %v68 = vadd.f32 %v66, %v67
    %v69 = vrot.slane %v68, 1
    %v70 = vadd.f32 %v68, %v69
    %v71 = vadd.f32 %v45, %v49
    %v72 = vrot.slane %v71, 4
    %v73 = vadd.f32 %v71, %v72
    %v74 = vrot.slane %v73, 2
    %v75 = vadd.f32 %v73, %v74
    %v76 = vrot.slane %v75, 1
    %v77 = vadd.f32 %v75, %v76
    %v78 = vmul.f32 %v56, 0.0625
    %v79 = vmul.f32 %v63, 0.0625
    %v80 = vmul.f32 %v70, 0.0625
    %v81 = vmul.f32 %v77, 0.0625
    %v82 = vsub.f32 %v42, %v78
    %v83 = vsub.f32 %v43, %v79
    %v84 = vsub.f32 %v44, %v80
    %v85 = vsub.f32 %v45, %v81
    %v86 = vsub.f32 %v46, %v78
    %v87 = vsub.f32 %v47, %v79
    %v88 = vsub.f32 %v48, %v80
    %v89 = vsub.f32 %v49, %v81
    %v90 = vmul.f32 %v82, %v82
    %v91 = vmul.f32 %v83, %v83
    %v92 = vmul.f32 %v84, %v84
    %v93 = vmul.f32 %v85, %v85
    %v94 = vmul.f32 %v86, %v86
    %v95 = vmul.f32 %v87, %v87
    %v96 = vmul.f32 %v88, %v88
    %v97 = vmul.f32 %v89, %v89
    %v98 = vadd.f32 %v90, %v94
    %v99 = vrot.slane %v98, 4
    %v100 = vadd.f32 %v98, %v99
    %v101 = vrot.slane %v100, 2
    %v102 = vadd.f32 %v100, %v101
    %v103 = vrot.slane %v102, 1
    %v104 = vadd.f32 %v102, %v103
    %v105 = vadd.f32 %v91, %v95
    %v106 = vrot.slane %v105, 4
    %v107 = vadd.f32 %v105, %v106
    %v108 = vrot.slane %v107, 2
    %v109 = vadd.f32 %v107, %v108
    %v110 = vrot.slane %v109, 1
    %v111 = vadd.f32 %v109, %v110
    %v112 = vadd.f32 %v92, %v96
    %v113 = vrot.slane %v112, 4
    %v114 = vadd.f32 %v112, %v113
    %v115 = vrot.slane %v114, 2
    %v116 = vadd.f32 %v114, %v115
    %v117 = vrot.slane %v116, 1
    %v118 = vadd.f32 %v116, %v117
    %v119 = vadd.f32 %v93, %v97
    %v120 = vrot.slane %v119, 4
    %v121 = vadd.f32 %v119, %v120
    %v122 = vrot.slane %v121, 2
    %v123 = vadd.f32 %v121, %v122
    %v124 = vrot.slane %v123, 1
    %v125 = vadd.f32 %v123, %v124
    %v126 = vmul.f32 %v104, 0.06666667
    %v127 = vmul.f32 %v111, 0.06666667
    %v128 = vmul.f32 %v118, 0.06666667
    %v129 = vmul.f32 %v125, 0.06666667
    %v130 = vadd.f32 %v126, 1e-05
    %v131 = vadd.f32 %v127, 1e-05
    %v132 = vadd.f32 %v128, 1e-05
    %v133 = vadd.f32 %v129, 1e-05
    %v134 = vrcp.pop %v130
    %v135 = vmul.f32 1.0, %v134
    %v136 = vrcp.pop %v131
    %v137 = vmul.f32 1.0, %v136
    %v138 = vrcp.pop %v132
    %v139 = vmul.f32 1.0, %v138
    %v140 = vrcp.pop %v133
    %v141 = vmul.f32 1.0, %v140
    %v142 = vmul.f32 %v82, %v135
    %v143 = vmul.f32 %v83, %v137
    %v144 = vmul.f32 %v84, %v139
    %v145 = vmul.f32 %v85, %v141
    %v146 = vmul.f32 %v86, %v135
    %v147 = vmul.f32 %v87, %v137
    %v148 = vmul.f32 %v88, %v139
    %v149 = vmul.f32 %v89, %v141
    %150 = vst [vmem:[#allocation8] sm:$0xff] %v142
    %151 = vst [vmem:[#allocation8 + $0x8] sm:$0xff] %v143
    %152 = vst [vmem:[#allocation8 + $0x10] sm:$0xff] %v144
    %153 = vst [vmem:[#allocation8 + $0x18] sm:$0xff] %v145
    %154 = vst [vmem:[#allocation8 + $0x20] sm:$0xff] %v146
    %155 = vst [vmem:[#allocation8 + $0x28] sm:$0xff] %v147
    %156 = vst [vmem:[#allocation8 + $0x30] sm:$0xff] %v148
    %157 = vst [vmem:[#allocation8 + $0x38] sm:$0xff] %v149
    %v162 = vcombine.low %v78, %v79
    %v163 = vcombine.low %v80, %v81
    %v165 = vunpack.c.l.s4 1966171168
    %v166 = vunpack.c.0.s8 %v165
    %v167 = vlaneseq
    %v168 = vshrl.u32 %v167, 7
    %v169 = vsub.s32 %v166, %v168
    %v170 = vrot.slane %v162, %v169
    %v172 = vunpack.c.l.s4 1966171168
    %v173 = vunpack.c.0.s8 %v172
    %v174 = vlaneseq
    %v175 = vshrl.u32 %v174, 7
    %v176 = vsub.s32 %v173, %v175
    %v177 = vrot.slane %v163, %v176
    %v178 = vcombine.low %v170, %v177
    %v180 = vunpack.c.l.s4 1966171168
    %v181 = vunpack.c.0.s8 %v180
    %v182 = vlaneseq
    %v183 = vshrl.u32 %v182, 7
    %v184 = vsub.s32 %v181, %v183
    %v185 = vrot.slane %v178, %v184
    %v187 = vlaneseq
    %vm188 = vcmp.ge.s32.totalorder %v187, 0
    %vm189 = vcmp.lt.s32.totalorder %v187, 512
    %vm190 = vmand %vm188, %vm189
    %191 = vst.msk [vmem:[#allocation7] ss:$2 sm:$0xf] %vm190, %v185
    %v196 = vcombine.low %v126, %v127
    %v197 = vcombine.low %v128, %v129
    %v199 = vunpack.c.l.s4 1966171168
    %v200 = vunpack.c.0.s8 %v199
    %v201 = vlaneseq
    %v202 = vshrl.u32 %v201, 7
    %v203 = vsub.s32 %v200, %v202
    %v204 = vrot.slane %v196, %v203
    %v206 = vunpack.c.l.s4 1966171168
    %v207 = vunpack.c.0.s8 %v206
    %v208 = vlaneseq
    %v209 = vshrl.u32 %v208, 7
    %v210 = vsub.s32 %v207, %v209
    %v211 = vrot.slane %v197, %v210
    %v212 = vcombine.low %v204, %v211
    %v214 = vunpack.c.l.s4 1966171168
    %v215 = vunpack.c.0.s8 %v214
    %v216 = vlaneseq
    %v217 = vshrl.u32 %v216, 7
    %v218 = vsub.s32 %v215, %v217
    %v219 = vrot.slane %v212, %v218
    %s221 = scalar_lea.vmem [#allocation7], 1
    %222 = vst.msk [vmem:[%s221] ss:$2 sm:$0xf] %vm190, %v219
    %v223 = vld [vmem:[#allocation5] sm:$0xff]
    %v224 = vmul.f32 %v223, 0.9
    %v225 = vmul.f32 %v78, 0.1
    %v226 = vmul.f32 %v79, 0.1
    %v227 = vmul.f32 %v80, 0.1
    %v228 = vmul.f32 %v81, 0.1
    %v233 = vcombine.low %v225, %v226
    %v234 = vcombine.low %v227, %v228
    %v236 = vunpack.c.l.s4 1983009808
    %v237 = vunpack.c.0.s8 %v236
    %v238 = vlaneseq
    %v239 = vshrl.u32 %v238, 7
    %v240 = vsub.s32 %v237, %v239
    %v241 = vrot.slane %v233, %v240
    %v243 = vunpack.c.l.s4 1983009808
    %v244 = vunpack.c.0.s8 %v243
    %v245 = vlaneseq
    %v246 = vshrl.u32 %v245, 7
    %v247 = vsub.s32 %v244, %v246
    %v248 = vrot.slane %v234, %v247
    %v249 = vcombine.low %v241, %v248
    %v251 = vadd.f32 %v224, %v249
    %v254 = vunpack.c.l.s4 1966171168
    %v255 = vunpack.c.0.s8 %v254
    %v256 = vlaneseq
    %v257 = vshrl.u32 %v256, 7
    %v258 = vsub.s32 %v255, %v257
    %v259 = vrot.slane %v251, %v258
    %261 = vst.msk [vmem:[#allocation10] ss:$2 sm:$0xf] %vm190, %v259
    %v262 = vmul.f32 %v126, 0.1
    %v263 = vmul.f32 %v127, 0.1
    %v264 = vmul.f32 %v128, 0.1
    %v265 = vmul.f32 %v129, 0.1
    %v270 = vcombine.low %v262, %v263
    %v271 = vcombine.low %v264, %v265
    %v273 = vunpack.c.l.s4 1983009808
    %v274 = vunpack.c.0.s8 %v273
    %v275 = vlaneseq
    %v276 = vshrl.u32 %v275, 7
    %v277 = vsub.s32 %v274, %v276
    %v278 = vrot.slane %v270, %v277
    %v280 = vunpack.c.l.s4 1983009808
    %v281 = vunpack.c.0.s8 %v280
    %v282 = vlaneseq
    %v283 = vshrl.u32 %v282, 7
    %v284 = vsub.s32 %v281, %v283
    %v285 = vrot.slane %v271, %v284
    %v286 = vcombine.low %v278, %v285
    %v287 = vrot.slane %v286, 7
    %v289 = vadd.f32 %v224, %v287
    %v292 = vunpack.c.l.s4 1966171168
    %v293 = vunpack.c.0.s8 %v292
    %v294 = vlaneseq
    %v295 = vshrl.u32 %v294, 7
    %v296 = vsub.s32 %v293, %v295
    %v297 = vrot.slane %v289, %v296
    %v298 = vcombine.high %v297, %v297
    %s300 = scalar_lea.vmem [#allocation10], 1
    %301 = vst.msk [vmem:[%s300] ss:$2 sm:$0xf] %vm190, %v298
    // Predicated region
    $region18: #{tpu_custom_call.1} parent=1 // pred_check
      _
    $region19: #{tpu_custom_call.1} parent=1 // pred_check_branch
      %303 = sbr.rel (0) target = $region21
    $region20: #{tpu_custom_call.1} parent=1 // pred_region
      %s305 = ssub.s32 128, 128
      %306 = vsyncadd [#allocation4], %s305
      %s308 = sshll.u32 [#allocation7], 4
      %s309 = int_to_ptr.vmem [resolvable:$true] %s308
      %311 = dma.vmem_to_hbm [thread:$0]  %s309, 128, %s2, [#allocation4]
    $region21: #{tpu_custom_call.1} parent=1 // pred_fallthru
      _
    // Predicated region
    $region22: #{tpu_custom_call.1} parent=1 // pred_check
      _
    $region23: #{tpu_custom_call.1} parent=1 // pred_check_branch
      %313 = sbr.rel (0) target = $region25
    $region24: #{tpu_custom_call.1} parent=1 // pred_region
      %s315 = ssub.s32 1024, 1024
      %316 = vsyncadd [#allocation9], %s315
      %s317 = sshll.u32 [#allocation8], 4
      %s318 = int_to_ptr.vmem [resolvable:$true] %s317
      %323 = dma.vmem_to_hbm [thread:$0]  %s318, 1024, %s3, [#allocation9], 512, 512, 32
    $region25: #{tpu_custom_call.1} parent=1 // pred_fallthru
      _
    // Predicated region
    $region26: #{tpu_custom_call.1} parent=1 // pred_check
      _
    $region27: #{tpu_custom_call.1} parent=1 // pred_check_branch
      %325 = sbr.rel (0) target = $region29
    $region28: #{tpu_custom_call.1} parent=1 // pred_region
      %s327 = ssub.s32 128, 128
      %328 = vsyncadd [#allocation9], %s327
      %s330 = sshll.u32 [#allocation10], 4
      %s331 = int_to_ptr.vmem [resolvable:$true] %s330
      %333 = dma.vmem_to_hbm [thread:$0]  %s331, 128, %s4, [#allocation9]
    $region29: #{tpu_custom_call.1} parent=1 // pred_fallthru
      _
    // Predicated region
    $region30: #{tpu_custom_call.1} parent=1 // pred_check
      _
    $region31: #{tpu_custom_call.1} parent=1 // pred_check_branch
      %335 = sbr.rel (0) target = $region33
    $region32: #{tpu_custom_call.1} parent=1 // pred_region
      %336 = dma.done [#allocation4], 128
    $region33: #{tpu_custom_call.1} parent=1 // pred_fallthru
      _
    // Predicated region
    $region34: #{tpu_custom_call.1} parent=1 // pred_check
      _
    $region35: #{tpu_custom_call.1} parent=1 // pred_check_branch
      %338 = sbr.rel (0) target = $region37
    $region36: #{tpu_custom_call.1} parent=1 // pred_region
      %339 = dma.done [#allocation9], 1024
    $region37: #{tpu_custom_call.1} parent=1 // pred_fallthru
      _
    // Predicated region
    $region38: #{tpu_custom_call.1} parent=1 // pred_check
      _
    $region39: #{tpu_custom_call.1} parent=1 // pred_check_branch
      %341 = sbr.rel (0) target = $region41
    $region40: #{tpu_custom_call.1} parent=1 // pred_region
      %342 = dma.done [#allocation9], 128
    $region41: #{tpu_custom_call.1} parent=1 // pred_fallthru
      _
    %343 = vsyncpa [#allocation3], 1
    %344 = vsyncpa [#allocation6], 1
    %345 = vsyncpa [#allocation4], 1
    %346 = vsyncpa [#allocation9], 1

</llo_original>
